<compile_context>
chip_gen: v7x
topology: tpu7x:2x2x1
jax: 0.10.0
libtpu: 0.0.40
codegen_flags: <defaults>
</compile_context>

<pallas_src>
import functools

import jax
import jax.numpy as jnp
from jax.experimental import pallas as pl
from jax.experimental.pallas import tpu as pltpu


# --------------------------------------------------------------------------- #
# Kernel: whole RealPEMLP forward in one grid-less pallas_call.
# --------------------------------------------------------------------------- #
def _realpemlp_kernel(
    x_ref,      # (2, B, N)  stacked [real, imag] input planes, f32
    pe_w_ref,   # (L, 2, N)  PELinear complex weights: [l, 0]=real, [l, 1]=imag
    pe_b_ref,   # (L, 2, 1)  PELinear complex biases
    pe_m_ref,   # (L, B, N)  binary Bernoulli(1-p) masks for ComplexDropout
    fw1_ref,    # (2, N, H)  head Linear(2N->H) weight, pre-transposed & split
    fb1_ref,    # (1, H)
    f_m_ref,    # (B, H)     binary mask for the real Dropout
    fw2_ref,    # (H, O)     head Linear(H->O) weight, pre-transposed
    fb2_ref,    # (1, O)
    out_ref,    # (B, O)
    *,
    num_pe_layers,
    inv_keep,
):
    xr = x_ref[0]   # (B, N)
    xi = x_ref[1]   # (B, N)

    for l in range(num_pe_layers):
        w = pe_w_ref[l]            # (2, N)
        wr = w[0:1, :]             # (1, N)
        wi = w[1:2, :]
        b = pe_b_ref[l]            # (2, 1)
        br = b[0:1, :]             # (1, 1)
        bi = b[1:2, :]

        # PELinear: S[i, j] = w[i] + conj(w[j])  (rank-2)  =>
        #   (x @ S)[b, j] = (x[b] . w) + sum_i(x[b, i]) * conj(w[j])
        sxr = jnp.sum(xr, axis=-1, keepdims=True)                  # (B, 1)
        sxi = jnp.sum(xi, axis=-1, keepdims=True)                  # (B, 1)
        dwr = jnp.sum(xr * wr - xi * wi, axis=-1, keepdims=True)   # Re(x.w)
        dwi = jnp.sum(xr * wi + xi * wr, axis=-1, keepdims=True)   # Im(x.w)

        yr = dwr + sxr * wr + sxi * wi + br
        yi = dwi + sxi * wr - sxr * wi + bi

        # ComplexReLU
        yr = jnp.maximum(yr, 0.0)
        yi = jnp.maximum(yi, 0.0)

        # ComplexDropout: SAME mask on real & imag, inverted scaling 1/(1-p).
        m = pe_m_ref[l] * inv_keep                                  # (B, N)
        xr = yr * m
        xi = yi * m

    # Real head: concat([real, imag], -1) @ W1^T == real @ W1r + imag @ W1i.
    h = (
        jnp.dot(xr, fw1_ref[0], preferred_element_type=jnp.float32)
        + jnp.dot(xi, fw1_ref[1], preferred_element_type=jnp.float32)
        + fb1_ref[...]
    )
    h = jnp.maximum(h, 0.0)                       # ReLU
    h = h * (f_m_ref[...] * inv_keep)             # Dropout
    out_ref[...] = (
        jnp.dot(h, fw2_ref[...], preferred_element_type=jnp.float32) + fb2_ref[...]
    )


# --------------------------------------------------------------------------- #
# Host-side helpers.
# --------------------------------------------------------------------------- #
def _dropout_masks(rng_key, p, training, num_pe, B, N, H):
    """Binary Bernoulli(1-p) masks (0/1) + inverted-dropout scale 1/(1-p)."""
    if (not training) or p == 0.0:
        return (
            jnp.ones((num_pe, B, N), jnp.float32),
            jnp.ones((B, H), jnp.float32),
            1.0,
        )
    if p >= 1.0:
        raise ValueError("dropout_rate must be in [0, 1) for a finite 1/(1-p) scale")
    if rng_key is None:
        raise ValueError("rng_key is required when training with dropout_rate > 0")
    keep = 1.0 - p
    keys = jax.random.split(rng_key, num_pe + 1)
    pe_masks = jnp.stack(
        [
            jax.random.bernoulli(keys[l], keep, (B, N)).astype(jnp.float32)
            for l in range(num_pe)
        ],
        axis=0,
    )
    f_mask = jax.random.bernoulli(keys[num_pe], keep, (B, H)).astype(jnp.float32)
    return pe_masks, f_mask, float(1.0 / keep)


def init_realpemlp_params(key, input_dim, hidden_dims, output_dim):
    """Parameters in kernel-friendly layout (PyTorch-like init scales)."""
    # PELinear preserves its feature dim, so a shape-consistent RealPEMLP needs
    # input_dim == hidden_dims[i] for every PE block (same constraint as torch).
    num_pe = len(hidden_dims) - 1
    assert all(h == input_dim for h in hidden_dims[:-1]), (
        "RealPEMLP requires input_dim == hidden_dims[:-1] (PELinear preserves dim)"
    )
    N = input_dim
    H = hidden_dims[-1]
    k = jax.random.split(key, 6)
    inv_sqrt_n = 1.0 / (N ** 0.5)
    pe_w = jax.random.normal(k[0], (num_pe, 2, N), jnp.float32) * inv_sqrt_n
    pe_b = jax.random.normal(k[1], (num_pe, 2, 1), jnp.float32) * inv_sqrt_n
    lim1 = 1.0 / ((2 * N) ** 0.5)
    fw1 = jax.random.uniform(k[2], (2, N, H), jnp.float32, -lim1, lim1)
    fb1 = jax.random.uniform(k[3], (1, H), jnp.float32, -lim1, lim1)
    lim2 = 1.0 / (H ** 0.5)
    fw2 = jax.random.uniform(k[4], (H, output_dim), jnp.float32, -lim2, lim2)
    fb2 = jax.random.uniform(k[5], (1, output_dim), jnp.float32, -lim2, lim2)
    return {"pe_w": pe_w, "pe_b": pe_b, "fw1": fw1, "fb1": fb1, "fw2": fw2, "fb2": fb2}


def realpemlp_forward(params, x, *, dropout_rate=0.1, rng_key=None, training=True):
    """Fused Pallas RealPEMLP forward. `x` is (B, N) complex64 (or float32)."""
    pe_w = params["pe_w"]
    num_pe, _, N = pe_w.shape
    H = params["fb1"].shape[-1]
    O = params["fw2"].shape[-1]

    # One-time split of the complex input into real/imag planes (single slab).
    if jnp.iscomplexobj(x):
        xr = jnp.real(x).astype(jnp.float32)
        xi = jnp.imag(x).astype(jnp.float32)
    else:
        xr = x.astype(jnp.float32)
        xi = jnp.zeros_like(xr)
    B = xr.shape[0]
    x_stacked = jnp.stack([xr, xi], axis=0)   # (2, B, N)

    pe_masks, f_mask, inv_keep = _dropout_masks(
        rng_key, dropout_rate, training, num_pe, B, N, H
    )

    kernel = functools.partial(
        _realpemlp_kernel, num_pe_layers=num_pe, inv_keep=inv_keep
    )
    vmem = pl.BlockSpec(memory_space=pltpu.MemorySpace.VMEM)
    return pl.pallas_call(
        kernel,
        out_shape=jax.ShapeDtypeStruct((B, O), jnp.float32),
        in_specs=[vmem] * 9,
        out_specs=vmem,
    )(
        x_stacked,
        pe_w,
        params["pe_b"],
        pe_masks,
        params["fw1"],
        params["fb1"],
        f_mask,
        params["fw2"],
        params["fb2"],
    )


def realpemlp_reference(params, x, pe_masks, f_mask, inv_keep):
    """Pure-JAX reference mirroring the PyTorch module (given the same masks)."""
    if not jnp.iscomplexobj(x):
        x = jax.lax.complex(x, jnp.zeros_like(x))
    num_pe = params["pe_w"].shape[0]
    for l in range(num_pe):
        w = jax.lax.complex(params["pe_w"][l, 0], params["pe_w"][l, 1])
        b = jax.lax.complex(params["pe_b"][l, 0, 0], params["pe_b"][l, 1, 0])
        sym = jnp.outer(w, jnp.ones_like(w))
        sym = sym + jnp.conj(sym.T)
        x = x @ sym + b
        x = jax.lax.complex(
            jnp.maximum(jnp.real(x), 0.0), jnp.maximum(jnp.imag(x), 0.0)
        )
        m = pe_masks[l] * inv_keep
        x = jax.lax.complex(jnp.real(x) * m, jnp.imag(x) * m)
    xcat = jnp.concatenate([jnp.real(x), jnp.imag(x)], axis=-1)
    w1 = jnp.concatenate([params["fw1"][0], params["fw1"][1]], axis=0)
    h = jnp.maximum(xcat @ w1 + params["fb1"], 0.0)
    h = h * (f_mask * inv_keep)
    return h @ params["fw2"] + params["fb2"]


# --------------------------------------------------------------------------- #
# Example / self-check.
# --------------------------------------------------------------------------- #
if __name__ == "__main__":
    B = 8
    input_dim = 32
    hidden_dims = [32, 32, 32]
    output_dim = 1
    dropout_rate = 0.1

    root = jax.random.PRNGKey(0)
    k_params, k_xr, k_xi, k_drop = jax.random.split(root, 4)

    params = init_realpemlp_params(k_params, input_dim, hidden_dims, output_dim)
    x = jax.lax.complex(
        jax.random.normal(k_xr, (B, input_dim), jnp.float32),
        jax.random.normal(k_xi, (B, input_dim), jnp.float32),
    )  # complex64, (B, input_dim)

    # Training mode (dropout active).
    out = realpemlp_forward(
        params, x, dropout_rate=dropout_rate, rng_key=k_drop, training=True
    )
    out = jax.block_until_ready(out)
    assert out.shape == (B, output_dim) and out.dtype == jnp.float32

    num_pe = len(hidden_dims) - 1
    pe_masks, f_mask, inv_keep = _dropout_masks(
        k_drop, dropout_rate, True, num_pe, B, input_dim, hidden_dims[-1]
    )
    ref = realpemlp_reference(params, x, pe_masks, f_mask, inv_keep)
    max_err = float(jnp.max(jnp.abs(out - ref)))
    assert jnp.allclose(out, ref, atol=2e-3, rtol=2e-3), (
        f"train-mode mismatch, max abs err {max_err}"
    )

    # Eval mode (dropout disabled -> deterministic forward).
    out_eval = jax.block_until_ready(
        realpemlp_forward(params, x, dropout_rate=dropout_rate, training=False)
    )
    ref_eval = realpemlp_reference(
        params,
        x,
        jnp.ones((num_pe, B, input_dim), jnp.float32),
        jnp.ones((B, hidden_dims[-1]), jnp.float32),
        1.0,
    )
    assert jnp.allclose(out_eval, ref_eval, atol=2e-3, rtol=2e-3), "eval-mode mismatch"

    print("KERNEL_OK")
</pallas_src>

<mosaic_0001>
module attributes {stable_mosaic.version = 11 : i64} {
  func.func @_realpemlp_kernel(%arg0: memref<2x8x32xf32, #tpu.memory_space<vmem>>, %arg1: memref<2x2x32xf32, #tpu.memory_space<vmem>>, %arg2: memref<2x2x1xf32, #tpu.memory_space<vmem>>, %arg3: memref<2x8x32xf32, #tpu.memory_space<vmem>>, %arg4: memref<2x32x32xf32, #tpu.memory_space<vmem>>, %arg5: memref<1x32xf32, #tpu.memory_space<vmem>>, %arg6: memref<8x32xf32, #tpu.memory_space<vmem>>, %arg7: memref<32x1xf32, #tpu.memory_space<vmem>>, %arg8: memref<1x1xf32, #tpu.memory_space<vmem>>, %arg9: memref<8x1xf32, #tpu.memory_space<vmem>>) attributes {dimension_semantics = [], scalar_prefetch = 0 : i64, scratch_operands = 0 : i64, tpu.core_type = #tpu.core_type<tc>} {
    %c0 = arith.constant 0 : index
    %c0_0 = arith.constant 0 : index
    %c0_1 = arith.constant 0 : index
    %0 = vector.load %arg0[%c0, %c0_0, %c0_1] : memref<2x8x32xf32, #tpu.memory_space<vmem>>, vector<1x8x32xf32>
    %1 = vector.shape_cast %0 : vector<1x8x32xf32> to vector<8x32xf32>
    %c1 = arith.constant 1 : index
    %c0_2 = arith.constant 0 : index
    %c0_3 = arith.constant 0 : index
    %2 = vector.load %arg0[%c1, %c0_2, %c0_3] : memref<2x8x32xf32, #tpu.memory_space<vmem>>, vector<1x8x32xf32>
    %3 = vector.shape_cast %2 : vector<1x8x32xf32> to vector<8x32xf32>
    %c0_4 = arith.constant 0 : index
    %c0_5 = arith.constant 0 : index
    %c0_6 = arith.constant 0 : index
    %4 = vector.load %arg1[%c0_4, %c0_5, %c0_6] : memref<2x2x32xf32, #tpu.memory_space<vmem>>, vector<1x2x32xf32>
    %5 = vector.shape_cast %4 : vector<1x2x32xf32> to vector<2x32xf32>
    %6 = vector.extract_strided_slice %5 {offsets = [0, 0], sizes = [1, 32], strides = [1, 1]} : vector<2x32xf32> to vector<1x32xf32>
    %7 = vector.extract_strided_slice %5 {offsets = [1, 0], sizes = [1, 32], strides = [1, 1]} : vector<2x32xf32> to vector<1x32xf32>
    %c0_7 = arith.constant 0 : index
    %c0_8 = arith.constant 0 : index
    %c0_9 = arith.constant 0 : index
    %8 = vector.load %arg2[%c0_7, %c0_8, %c0_9] : memref<2x2x1xf32, #tpu.memory_space<vmem>>, vector<1x2x1xf32>
    %9 = vector.shape_cast %8 : vector<1x2x1xf32> to vector<2x1xf32>
    %10 = vector.extract_strided_slice %9 {offsets = [0, 0], sizes = [1, 1], strides = [1, 1]} : vector<2x1xf32> to vector<1x1xf32>
    %11 = vector.extract_strided_slice %9 {offsets = [1, 0], sizes = [1, 1], strides = [1, 1]} : vector<2x1xf32> to vector<1x1xf32>
    %cst = arith.constant dense<0.000000e+00> : vector<8xf32>
    %12 = vector.multi_reduction <add>, %1, %cst [1] : vector<8x32xf32> to vector<8xf32>
    %13 = vector.shape_cast %12 : vector<8xf32> to vector<8x1xf32>
    %cst_10 = arith.constant dense<0.000000e+00> : vector<8xf32>
    %14 = vector.multi_reduction <add>, %3, %cst_10 [1] : vector<8x32xf32> to vector<8xf32>
    %15 = vector.shape_cast %14 : vector<8xf32> to vector<8x1xf32>
    %16 = vector.broadcast %6 : vector<1x32xf32> to vector<8x32xf32>
    %17 = arith.mulf %1, %16 : vector<8x32xf32>
    %18 = vector.broadcast %7 : vector<1x32xf32> to vector<8x32xf32>
    %19 = arith.mulf %3, %18 : vector<8x32xf32>
    %20 = arith.subf %17, %19 : vector<8x32xf32>
    %cst_11 = arith.constant dense<0.000000e+00> : vector<8xf32>
    %21 = vector.multi_reduction <add>, %20, %cst_11 [1] : vector<8x32xf32> to vector<8xf32>
    %22 = vector.shape_cast %21 : vector<8xf32> to vector<8x1xf32>
    %23 = vector.broadcast %7 : vector<1x32xf32> to vector<8x32xf32>
    %24 = arith.mulf %1, %23 : vector<8x32xf32>
    %25 = vector.broadcast %6 : vector<1x32xf32> to vector<8x32xf32>
    %26 = arith.mulf %3, %25 : vector<8x32xf32>
    %27 = arith.addf %24, %26 : vector<8x32xf32>
    %cst_12 = arith.constant dense<0.000000e+00> : vector<8xf32>
    %28 = vector.multi_reduction <add>, %27, %cst_12 [1] : vector<8x32xf32> to vector<8xf32>
    %29 = vector.shape_cast %28 : vector<8xf32> to vector<8x1xf32>
    %30 = vector.broadcast %13 : vector<8x1xf32> to vector<8x32xf32>
    %31 = vector.broadcast %6 : vector<1x32xf32> to vector<8x32xf32>
    %32 = arith.mulf %30, %31 : vector<8x32xf32>
    %33 = vector.broadcast %22 : vector<8x1xf32> to vector<8x32xf32>
    %34 = arith.addf %33, %32 : vector<8x32xf32>
    %35 = vector.broadcast %15 : vector<8x1xf32> to vector<8x32xf32>
    %36 = vector.broadcast %7 : vector<1x32xf32> to vector<8x32xf32>
    %37 = arith.mulf %35, %36 : vector<8x32xf32>
    %38 = arith.addf %34, %37 : vector<8x32xf32>
    %39 = vector.broadcast %10 : vector<1x1xf32> to vector<8x32xf32>
    %40 = arith.addf %38, %39 : vector<8x32xf32>
    %41 = vector.broadcast %15 : vector<8x1xf32> to vector<8x32xf32>
    %42 = vector.broadcast %6 : vector<1x32xf32> to vector<8x32xf32>
    %43 = arith.mulf %41, %42 : vector<8x32xf32>
    %44 = vector.broadcast %29 : vector<8x1xf32> to vector<8x32xf32>
    %45 = arith.addf %44, %43 : vector<8x32xf32>
    %46 = vector.broadcast %13 : vector<8x1xf32> to vector<8x32xf32>
    %47 = vector.broadcast %7 : vector<1x32xf32> to vector<8x32xf32>
    %48 = arith.mulf %46, %47 : vector<8x32xf32>
    %49 = arith.subf %45, %48 : vector<8x32xf32>
    %50 = vector.broadcast %11 : vector<1x1xf32> to vector<8x32xf32>
    %51 = arith.addf %49, %50 : vector<8x32xf32>
    %cst_13 = arith.constant 0.000000e+00 : f32
    %52 = vector.broadcast %cst_13 : f32 to vector<8x32xf32>
    %53 = arith.maximumf %40, %52 : vector<8x32xf32>
    %cst_14 = arith.constant 0.000000e+00 : f32
    %54 = vector.broadcast %cst_14 : f32 to vector<8x32xf32>
    %55 = arith.maximumf %51, %54 : vector<8x32xf32>
    %c0_15 = arith.constant 0 : index
    %c0_16 = arith.constant 0 : index
    %c0_17 = arith.constant 0 : index
    %56 = vector.load %arg3[%c0_15, %c0_16, %c0_17] : memref<2x8x32xf32, #tpu.memory_space<vmem>>, vector<1x8x32xf32>
    %57 = vector.shape_cast %56 : vector<1x8x32xf32> to vector<8x32xf32>
    %cst_18 = arith.constant 1.11111116 : f32
    %58 = vector.broadcast %cst_18 : f32 to vector<8x32xf32>
    %59 = arith.mulf %57, %58 : vector<8x32xf32>
    %60 = arith.mulf %53, %59 : vector<8x32xf32>
    %61 = arith.mulf %55, %59 : vector<8x32xf32>
    %c1_19 = arith.constant 1 : index
    %c0_20 = arith.constant 0 : index
    %c0_21 = arith.constant 0 : index
    %62 = vector.load %arg1[%c1_19, %c0_20, %c0_21] : memref<2x2x32xf32, #tpu.memory_space<vmem>>, vector<1x2x32xf32>
    %63 = vector.shape_cast %62 : vector<1x2x32xf32> to vector<2x32xf32>
    %64 = vector.extract_strided_slice %63 {offsets = [0, 0], sizes = [1, 32], strides = [1, 1]} : vector<2x32xf32> to vector<1x32xf32>
    %65 = vector.extract_strided_slice %63 {offsets = [1, 0], sizes = [1, 32], strides = [1, 1]} : vector<2x32xf32> to vector<1x32xf32>
    %c1_22 = arith.constant 1 : index
    %c0_23 = arith.constant 0 : index
    %c0_24 = arith.constant 0 : index
    %66 = vector.load %arg2[%c1_22, %c0_23, %c0_24] : memref<2x2x1xf32, #tpu.memory_space<vmem>>, vector<1x2x1xf32>
    %67 = vector.shape_cast %66 : vector<1x2x1xf32> to vector<2x1xf32>
    %68 = vector.extract_strided_slice %67 {offsets = [0, 0], sizes = [1, 1], strides = [1, 1]} : vector<2x1xf32> to vector<1x1xf32>
    %69 = vector.extract_strided_slice %67 {offsets = [1, 0], sizes = [1, 1], strides = [1, 1]} : vector<2x1xf32> to vector<1x1xf32>
    %cst_25 = arith.constant dense<0.000000e+00> : vector<8xf32>
    %70 = vector.multi_reduction <add>, %60, %cst_25 [1] : vector<8x32xf32> to vector<8xf32>
    %71 = vector.shape_cast %70 : vector<8xf32> to vector<8x1xf32>
    %cst_26 = arith.constant dense<0.000000e+00> : vector<8xf32>
    %72 = vector.multi_reduction <add>, %61, %cst_26 [1] : vector<8x32xf32> to vector<8xf32>
    %73 = vector.shape_cast %72 : vector<8xf32> to vector<8x1xf32>
    %74 = vector.broadcast %64 : vector<1x32xf32> to vector<8x32xf32>
    %75 = arith.mulf %60, %74 : vector<8x32xf32>
    %76 = vector.broadcast %65 : vector<1x32xf32> to vector<8x32xf32>
    %77 = arith.mulf %61, %76 : vector<8x32xf32>
    %78 = arith.subf %75, %77 : vector<8x32xf32>
    %cst_27 = arith.constant dense<0.000000e+00> : vector<8xf32>
    %79 = vector.multi_reduction <add>, %78, %cst_27 [1] : vector<8x32xf32> to vector<8xf32>
    %80 = vector.shape_cast %79 : vector<8xf32> to vector<8x1xf32>
    %81 = vector.broadcast %65 : vector<1x32xf32> to vector<8x32xf32>
    %82 = arith.mulf %60, %81 : vector<8x32xf32>
    %83 = vector.broadcast %64 : vector<1x32xf32> to vector<8x32xf32>
    %84 = arith.mulf %61, %83 : vector<8x32xf32>
    %85 = arith.addf %82, %84 : vector<8x32xf32>
    %cst_28 = arith.constant dense<0.000000e+00> : vector<8xf32>
    %86 = vector.multi_reduction <add>, %85, %cst_28 [1] : vector<8x32xf32> to vector<8xf32>
    %87 = vector.shape_cast %86 : vector<8xf32> to vector<8x1xf32>
    %88 = vector.broadcast %71 : vector<8x1xf32> to vector<8x32xf32>
    %89 = vector.broadcast %64 : vector<1x32xf32> to vector<8x32xf32>
    %90 = arith.mulf %88, %89 : vector<8x32xf32>
    %91 = vector.broadcast %80 : vector<8x1xf32> to vector<8x32xf32>
    %92 = arith.addf %91, %90 : vector<8x32xf32>
    %93 = vector.broadcast %73 : vector<8x1xf32> to vector<8x32xf32>
    %94 = vector.broadcast %65 : vector<1x32xf32> to vector<8x32xf32>
    %95 = arith.mulf %93, %94 : vector<8x32xf32>
    %96 = arith.addf %92, %95 : vector<8x32xf32>
    %97 = vector.broadcast %68 : vector<1x1xf32> to vector<8x32xf32>
    %98 = arith.addf %96, %97 : vector<8x32xf32>
    %99 = vector.broadcast %73 : vector<8x1xf32> to vector<8x32xf32>
    %100 = vector.broadcast %64 : vector<1x32xf32> to vector<8x32xf32>
    %101 = arith.mulf %99, %100 : vector<8x32xf32>
    %102 = vector.broadcast %87 : vector<8x1xf32> to vector<8x32xf32>
    %103 = arith.addf %102, %101 : vector<8x32xf32>
    %104 = vector.broadcast %71 : vector<8x1xf32> to vector<8x32xf32>
    %105 = vector.broadcast %65 : vector<1x32xf32> to vector<8x32xf32>
    %106 = arith.mulf %104, %105 : vector<8x32xf32>
    %107 = arith.subf %103, %106 : vector<8x32xf32>
    %108 = vector.broadcast %69 : vector<1x1xf32> to vector<8x32xf32>
    %109 = arith.addf %107, %108 : vector<8x32xf32>
    %cst_29 = arith.constant 0.000000e+00 : f32
    %110 = vector.broadcast %cst_29 : f32 to vector<8x32xf32>
    %111 = arith.maximumf %98, %110 : vector<8x32xf32>
    %cst_30 = arith.constant 0.000000e+00 : f32
    %112 = vector.broadcast %cst_30 : f32 to vector<8x32xf32>
    %113 = arith.maximumf %109, %112 : vector<8x32xf32>
    %c1_31 = arith.constant 1 : index
    %c0_32 = arith.constant 0 : index
    %c0_33 = arith.constant 0 : index
    %114 = vector.load %arg3[%c1_31, %c0_32, %c0_33] : memref<2x8x32xf32, #tpu.memory_space<vmem>>, vector<1x8x32xf32>
    %115 = vector.shape_cast %114 : vector<1x8x32xf32> to vector<8x32xf32>
    %cst_34 = arith.constant 1.11111116 : f32
    %116 = vector.broadcast %cst_34 : f32 to vector<8x32xf32>
    %117 = arith.mulf %115, %116 : vector<8x32xf32>
    %118 = arith.mulf %111, %117 : vector<8x32xf32>
    %119 = arith.mulf %113, %117 : vector<8x32xf32>
    %c0_35 = arith.constant 0 : index
    %c0_36 = arith.constant 0 : index
    %c0_37 = arith.constant 0 : index
    %120 = vector.load %arg4[%c0_35, %c0_36, %c0_37] : memref<2x32x32xf32, #tpu.memory_space<vmem>>, vector<1x32x32xf32>
    %121 = vector.shape_cast %120 : vector<1x32x32xf32> to vector<32x32xf32>
    %cst_38 = arith.constant dense<0.000000e+00> : vector<8x32xf32>
    %122 = tpu.matmul %118, %121, %cst_38 {dimension_numbers = #tpu.dot_dimension_numbers<[1], [0], [0], [1], [0, 0, 1, 1], [], []>} : vector<8x32xf32>, vector<32x32xf32>, vector<8x32xf32> -> vector<8x32xf32>
    %c1_39 = arith.constant 1 : index
    %c0_40 = arith.constant 0 : index
    %c0_41 = arith.constant 0 : index
    %123 = vector.load %arg4[%c1_39, %c0_40, %c0_41] : memref<2x32x32xf32, #tpu.memory_space<vmem>>, vector<1x32x32xf32>
    %124 = vector.shape_cast %123 : vector<1x32x32xf32> to vector<32x32xf32>
    %cst_42 = arith.constant dense<0.000000e+00> : vector<8x32xf32>
    %125 = tpu.matmul %119, %124, %cst_42 {dimension_numbers = #tpu.dot_dimension_numbers<[1], [0], [0], [1], [0, 0, 1, 1], [], []>} : vector<8x32xf32>, vector<32x32xf32>, vector<8x32xf32> -> vector<8x32xf32>
    %126 = arith.addf %122, %125 : vector<8x32xf32>
    %c0_43 = arith.constant 0 : index
    %c0_44 = arith.constant 0 : index
    %127 = vector.load %arg5[%c0_43, %c0_44] : memref<1x32xf32, #tpu.memory_space<vmem>>, vector<1x32xf32>
    %128 = vector.broadcast %127 : vector<1x32xf32> to vector<8x32xf32>
    %129 = arith.addf %126, %128 : vector<8x32xf32>
    %cst_45 = arith.constant 0.000000e+00 : f32
    %130 = vector.broadcast %cst_45 : f32 to vector<8x32xf32>
    %131 = arith.maximumf %129, %130 : vector<8x32xf32>
    %c0_46 = arith.constant 0 : index
    %c0_47 = arith.constant 0 : index
    %132 = vector.load %arg6[%c0_46, %c0_47] : memref<8x32xf32, #tpu.memory_space<vmem>>, vector<8x32xf32>
    %cst_48 = arith.constant 1.11111116 : f32
    %133 = vector.broadcast %cst_48 : f32 to vector<8x32xf32>
    %134 = arith.mulf %132, %133 : vector<8x32xf32>
    %135 = arith.mulf %131, %134 : vector<8x32xf32>
    %c0_49 = arith.constant 0 : index
    %c0_50 = arith.constant 0 : index
    %136 = vector.load %arg7[%c0_49, %c0_50] : memref<32x1xf32, #tpu.memory_space<vmem>>, vector<32x1xf32>
    %cst_51 = arith.constant dense<0.000000e+00> : vector<8x1xf32>
    %137 = tpu.matmul %135, %136, %cst_51 {dimension_numbers = #tpu.dot_dimension_numbers<[1], [0], [0], [1], [0, 0, 1, 1], [], []>} : vector<8x32xf32>, vector<32x1xf32>, vector<8x1xf32> -> vector<8x1xf32>
    %c0_52 = arith.constant 0 : index
    %c0_53 = arith.constant 0 : index
    %138 = vector.load %arg8[%c0_52, %c0_53] : memref<1x1xf32, #tpu.memory_space<vmem>>, vector<1x1xf32>
    %139 = vector.broadcast %138 : vector<1x1xf32> to vector<8x1xf32>
    %140 = arith.addf %137, %139 : vector<8x1xf32>
    %c0_54 = arith.constant 0 : index
    %c0_55 = arith.constant 0 : index
    %141 = vector.load %arg9[%c0_54, %c0_55] : memref<8x1xf32, #tpu.memory_space<vmem>>, vector<8x1xf32>
    tpu.vector_store %arg9[%c0_54, %c0_55], %140 {strides = array<i32>} : memref<8x1xf32, #tpu.memory_space<vmem>>, vector<8x1xf32>,
    return
  }
}

</mosaic_0001>

<llo_original>
// kernel: tpu_custom_call.1
$region0: #{tpu_custom_call.1}
  #allocation0 [shape = 'u32[]', space=smem, size = 0x4, offset = 0x4, fixed_abs, tag = 'smem constant byte address 0x4 - core index']
  #allocation1 [shape = 'u32[144,128]{1,0:T(1,128)}', space=vmem, size = 0x12000, scoped, tag = 'internal scratch']
  #allocation2 [shape = 'f32[1,1]{1,0:T(1,128)S(1)}', space=vmem, size = 0x200, scoped, tag = 'scoped memory for tpu_custom_call.1']
  %s0 = inlined_call_operand.vmem [shape: f32[2,8,32], index: 0, kind: input, shape index: {}]
  %s1 = inlined_call_operand.vmem [shape: f32[2,2,32], index: 1, kind: input, shape index: {}]
  %s2 = inlined_call_operand.vmem [shape: f32[2,2,1], index: 2, kind: input, shape index: {}]
  %s3 = inlined_call_operand.vmem [shape: f32[2,8,32], index: 3, kind: input, shape index: {}]
  %s4 = inlined_call_operand.hbm [shape: f32[2,32,32], index: 4, kind: input, shape index: {}]
  %s5 = inlined_call_operand.vmem [shape: f32[1,32], index: 5, kind: input, shape index: {}]
  %s6 = inlined_call_operand.vmem [shape: f32[8,32], index: 6, kind: input, shape index: {}]
  %s7 = inlined_call_operand.vmem [shape: f32[32,1], index: 7, kind: input, shape index: {}]
  %s8 = inlined_call_operand.<no memory space> [shape: f32[1,1], index: 8, kind: input, shape index: {}]
  %s9 = inlined_call_operand.vmem [shape: f32[8,1], index: 9, kind: output, shape index: {}]
  %s10 = sld [smem:[#allocation0]]
  $region50: #{tpu_custom_call.1} parent=0
    _
  %s12 = ssub.s32 1, %s10
  %s13 = scalar_select 0, %s12, %s10
  %v14 = vstv %s8
  %15 = vst [vmem:[#allocation2] sm:$0x1] %v14
  $region1: #{tpu_custom_call.1} parent=0
    #allocation3 [shape = 'u8[32768]{0}', space=vmem, size = 0x8000, scoped, tag = 'input window, operand 4, single buffered']
    #allocation4 [shape = 's32[1]{0}', space=sflag, size = 0x4, scoped, tag = 'scoped memory for tpu_custom_call.1']
    %16 = vsyncpa [#allocation4], 0
    // Predicated region
    $region2: #{tpu_custom_call.1} parent=1 // pred_check
      _
    $region3: #{tpu_custom_call.1} parent=1 // pred_check_branch
      %18 = sbr.rel (0) target = $region5
    $region4: #{tpu_custom_call.1} parent=1 // pred_region
      _
    $region5: #{tpu_custom_call.1} parent=1 // pred_fallthru
      _
    // Predicated region
    $region6: #{tpu_custom_call.1} parent=1 // pred_check
      _
    $region7: #{tpu_custom_call.1} parent=1 // pred_check_branch
      %20 = sbr.rel (0) target = $region9
    $region8: #{tpu_custom_call.1} parent=1 // pred_region
      _
    $region9: #{tpu_custom_call.1} parent=1 // pred_fallthru
      _
    // Predicated region
    $region10: #{tpu_custom_call.1} parent=1 // pred_check
      _
    $region11: #{tpu_custom_call.1} parent=1 // pred_check_branch
      %22 = sbr.rel (0) target = $region13
    $region12: #{tpu_custom_call.1} parent=1 // pred_region
      _
    $region13: #{tpu_custom_call.1} parent=1 // pred_fallthru
      _
    // Predicated region
    $region14: #{tpu_custom_call.1} parent=1 // pred_check
      _
    $region15: #{tpu_custom_call.1} parent=1 // pred_check_branch
      %24 = sbr.rel (0) target = $region17
    $region16: #{tpu_custom_call.1} parent=1 // pred_region
      _
    $region17: #{tpu_custom_call.1} parent=1 // pred_fallthru
      _
    // Predicated region
    $region18: #{tpu_custom_call.1} parent=1 // pred_check
      _
    $region19: #{tpu_custom_call.1} parent=1 // pred_check_branch
      %26 = sbr.rel (0) target = $region21
    $region20: #{tpu_custom_call.1} parent=1 // pred_region
      %s28 = ssub.s32 1024, 1024
      %29 = vsyncadd [#allocation4], %s28
      %s30 = sshll.u32 [#allocation3], 4
      %s31 = int_to_ptr.vmem [resolvable:$true] %s30
      %36 = dma.hbm_to_vmem [thread:$0]  %s4, 1024, %s31, [#allocation4], 128, 128, 8
    $region21: #{tpu_custom_call.1} parent=1 // pred_fallthru
      _
    // Predicated region
    $region22: #{tpu_custom_call.1} parent=1 // pred_check
      _
    $region23: #{tpu_custom_call.1} parent=1 // pred_check_branch
      %38 = sbr.rel (0) target = $region25
    $region24: #{tpu_custom_call.1} parent=1 // pred_region
      _
    $region25: #{tpu_custom_call.1} parent=1 // pred_fallthru
      _
    // Predicated region
    $region26: #{tpu_custom_call.1} parent=1 // pred_check
      _
    $region27: #{tpu_custom_call.1} parent=1 // pred_check_branch
      %40 = sbr.rel (0) target = $region29
    $region28: #{tpu_custom_call.1} parent=1 // pred_region
      _
    $region29: #{tpu_custom_call.1} parent=1 // pred_fallthru
      _
    // Predicated region
    $region30: #{tpu_custom_call.1} parent=1 // pred_check
      _
    $region31: #{tpu_custom_call.1} parent=1 // pred_check_branch
      %42 = sbr.rel (0) target = $region33
    $region32: #{tpu_custom_call.1} parent=1 // pred_region
      _
    $region33: #{tpu_custom_call.1} parent=1 // pred_fallthru
      _
    // Predicated region
    $region34: #{tpu_custom_call.1} parent=1 // pred_check
      _
    $region35: #{tpu_custom_call.1} parent=1 // pred_check_branch
      %44 = sbr.rel (0) target = $region37
    $region36: #{tpu_custom_call.1} parent=1 // pred_region
      _
    $region37: #{tpu_custom_call.1} parent=1 // pred_fallthru
      _
    // Predicated region
    $region38: #{tpu_custom_call.1} parent=1 // pred_check
      _
    $region39: #{tpu_custom_call.1} parent=1 // pred_check_branch
      %46 = sbr.rel (0) target = $region41
    $region40: #{tpu_custom_call.1} parent=1 // pred_region
      %47 = dma.done [#allocation4], 1024
    $region41: #{tpu_custom_call.1} parent=1 // pred_fallthru
      _
    %v48 = vld [vmem:[%s0] sm:$0xff]
    %s49 = scalar_lea.vmem %s0, 8
    %v50 = vld [vmem:[%s49] sm:$0xff]
    %v51 = vld [vmem:[%s1] sm:$0x3]
    %v52 = vld [vmem:[%s2] sm:$0x3]
    %vm53 = vcmask 261120
    %v54 = vsel %vm53, %v48, 0.0
    %55 = vadd.xlane.f32.xlu0 %v54
    %v56 = vpop.xlane.xlu0 %55
    %v57 = vsel %vm53, %v50, 0.0
    %58 = vadd.xlane.f32.xlu0 %v57
    %v59 = vpop.xlane.xlu0 %58
    %v60 = vlaneseq
    %v61 = vshrl.u32 %v60, 7
    %v62 = vsub.s32 0, %v61
    %v63 = vrot.slane %v51, %v62
    %v64 = vmul.f32 %v48, %v63
    %v65 = vlaneseq
    %v66 = vshrl.u32 %v65, 7
    %v67 = vsub.s32 1, %v66
    %v68 = vrot.slane %v51, %v67
    %v69 = vmul.f32 %v50, %v68
    %v70 = vsub.f32 %v64, %v69
    %v71 = vsel %vm53, %v70, 0.0
    %72 = vadd.xlane.f32.xlu0 %v71
    %v73 = vpop.xlane.xlu0 %72
    %v74 = vmul.f32 %v48, %v68
    %v75 = vmul.f32 %v50, %v63
    %v76 = vadd.f32 %v74, %v75
    %v77 = vsel %vm53, %v76, 0.0
    %78 = vadd.xlane.f32.xlu0 %v77
    %v79 = vpop.xlane.xlu0 %78
    %v80 = vmul.f32 %v56, %v63
    %v81 = vadd.f32 %v73, %v80
    %v82 = vmul.f32 %v59, %v68
    %v83 = vadd.f32 %v81, %v82
    %s85 = vtos %v52
    %v86 = vstv %s85
    %v88 = vadd.f32 %v83, %v86
    %v89 = vmul.f32 %v59, %v63
    %v90 = vadd.f32 %v79, %v89
    %v91 = vmul.f32 %v56, %v68
    %v92 = vsub.f32 %v90, %v91
    %v93 = vrot.slane %v52, 1
    %s94 = vtos %v93
    %v95 = vstv %s94
    %v97 = vadd.f32 %v92, %v95
    %v98 = vmax.f32 %v88, 0.0
    %v99 = vmax.f32 %v97, 0.0
    %v100 = vld [vmem:[%s3] sm:$0xff]
    %v101 = vmul.f32 %v100, 1.1111112
    %v102 = vmul.f32 %v98, %v101
    %v103 = vmul.f32 %v99, %v101
    %s104 = scalar_lea.vmem %s1, 2
    %v105 = vld [vmem:[%s104] sm:$0x3]
    %s106 = scalar_lea.vmem %s2, 2
    %v107 = vld [vmem:[%s106] sm:$0x3]
    %v108 = vsel %vm53, %v102, 0.0
    %109 = vadd.xlane.f32.xlu0 %v108
    %v110 = vpop.xlane.xlu0 %109
    %v111 = vsel %vm53, %v103, 0.0
    %112 = vadd.xlane.f32.xlu0 %v111
    %v113 = vpop.xlane.xlu0 %112
    %v114 = vlaneseq
    %v115 = vshrl.u32 %v114, 7
    %v116 = vsub.s32 0, %v115
    %v117 = vrot.slane %v105, %v116
    %v118 = vmul.f32 %v102, %v117
    %v119 = vlaneseq
    %v120 = vshrl.u32 %v119, 7
    %v121 = vsub.s32 1, %v120
    %v122 = vrot.slane %v105, %v121
    %v123 = vmul.f32 %v103, %v122
    %v124 = vsub.f32 %v118, %v123
    %v125 = vsel %vm53, %v124, 0.0
    %126 = vadd.xlane.f32.xlu0 %v125
    %v127 = vpop.xlane.xlu0 %126
    %v128 = vmul.f32 %v102, %v122
    %v129 = vmul.f32 %v103, %v117
    %v130 = vadd.f32 %v128, %v129
    %v131 = vsel %vm53, %v130, 0.0
    %132 = vadd.xlane.f32.xlu0 %v131
    %v133 = vpop.xlane.xlu0 %132
    %v134 = vmul.f32 %v110, %v117
    %v135 = vadd.f32 %v127, %v134
    %v136 = vmul.f32 %v113, %v122
    %v137 = vadd.f32 %v135, %v136
    %s139 = vtos %v107
    %v140 = vstv %s139
    %v142 = vadd.f32 %v137, %v140
    %v143 = vmul.f32 %v113, %v117
    %v144 = vadd.f32 %v133, %v143
    %v145 = vmul.f32 %v110, %v122
    %v146 = vsub.f32 %v144, %v145
    %v147 = vrot.slane %v107, 1
    %s148 = vtos %v147
    %v149 = vstv %s148
    %v151 = vadd.f32 %v146, %v149
    %v152 = vmax.f32 %v142, 0.0
    %v153 = vmax.f32 %v151, 0.0
    %s154 = scalar_lea.vmem %s3, 8
    %v155 = vld [vmem:[%s154] sm:$0xff]
    %v156 = vmul.f32 %v155, 1.1111112
    %v157 = vmul.f32 %v152, %v156
    %v158 = vmul.f32 %v153, %v156
    %v159 = vld [vmem:[#allocation3] sm:$0xff]
    %v160 = vld [vmem:[#allocation3 + $0x8] sm:$0xff]
    %v161 = vld [vmem:[#allocation3 + $0x10] sm:$0xff]
    %v162 = vld [vmem:[#allocation3 + $0x18] sm:$0xff]
    %s163 = scalar_lea.vmem [#allocation3], 32
    %v164 = vld [vmem:[%s163] sm:$0xff]
    %v165 = vld [vmem:[%s163 + $0x8] sm:$0xff]
    %v166 = vld [vmem:[%s163 + $0x10] sm:$0xff]
    %v167 = vld [vmem:[%s163 + $0x18] sm:$0xff]
    %v169 = vsel %vm53, %v158, 0
    %171 = vmatprep.subr.mxu0 0.0
    %172 = vmatpush1.msra.mxu0 %v164
    %173 = vmatprep.subr.mxu0 0.0
    %174 = vmatpush1.msra.mxu0 %v165
    %175 = vmatprep.subr.mxu0 0.0
    %176 = vmatpush1.msra.mxu0 %v166
    %177 = vmatprep.subr.mxu0 0.0
    %178 = vmatpush1.msra.mxu0 %v167
    %179 = vmatprep.subr.mxu0 0.0
    %180 = vmatpush1.msra.mxu0 0.0
    %181 = vmatprep.subr.mxu0 0.0
    %182 = vmatpush1.msra.mxu0 0.0
    %183 = vmatprep.subr.mxu0 0.0
    %184 = vmatpush1.msra.mxu0 0.0
    %185 = vmatprep.subr.mxu0 0.0
    %186 = vmatpush1.msra.mxu0 0.0
    %187 = vmatprep.subr.mxu0 0.0
    %188 = vmatpush1.msra.mxu0 0.0
    %189 = vmatprep.subr.mxu0 0.0
    %190 = vmatpush1.msra.mxu0 0.0
    %191 = vmatprep.subr.mxu0 0.0
    %192 = vmatpush1.msra.mxu0 0.0
    %193 = vmatprep.subr.mxu0 0.0
    %194 = vmatpush1.msra.mxu0 0.0
    %195 = vmatprep.subr.mxu0 0.0
    %196 = vmatpush1.msra.mxu0 0.0
    %197 = vmatprep.subr.mxu0 0.0
    %198 = vmatpush1.msra.mxu0 0.0
    %199 = vmatprep.subr.mxu0 0.0
    %200 = vmatpush1.msra.mxu0 0.0
    %201 = vmatprep.subr.mxu0 0.0
    %202 = vmatpush1.msra.mxu0 0.0
    %203 = vmatprep.subr.mxu0 0.0
    %204 = vmatpush1.msra.mxu0 0.0
    %205 = vmatprep.subr.mxu0 0.0
    %206 = vmatpush1.msra.mxu0 0.0
    %207 = vmatprep.subr.mxu0 0.0
    %208 = vmatpush1.msra.mxu0 0.0
    %209 = vmatprep.subr.mxu0 0.0
    %210 = vmatpush1.msra.mxu0 0.0
    %211 = vmatprep.subr.mxu0 0.0
    %212 = vmatpush1.msra.mxu0 0.0
    %213 = vmatprep.subr.mxu0 0.0
    %214 = vmatpush1.msra.mxu0 0.0
    %215 = vmatprep.subr.mxu0 0.0
    %216 = vmatpush1.msra.mxu0 0.0
    %217 = vmatprep.subr.mxu0 0.0
    %218 = vmatpush1.msra.mxu0 0.0
    %219 = vmatprep.subr.mxu0 0.0
    %220 = vmatpush1.msra.mxu0 0.0
    %221 = vmatprep.subr.mxu0 0.0
    %222 = vmatpush1.msra.mxu0 0.0
    %223 = vmatprep.subr.mxu0 0.0
    %224 = vmatpush1.msra.mxu0 0.0
    %225 = vmatprep.subr.mxu0 0.0
    %226 = vmatpush1.msra.mxu0 0.0
    %227 = vmatprep.subr.mxu0 0.0
    %228 = vmatpush1.msra.mxu0 0.0
    %229 = vmatprep.subr.mxu0 0.0
    %230 = vmatpush1.msra.mxu0 0.0
    %231 = vmatprep.subr.mxu0 0.0
    %232 = vmatpush1.msra.mxu0 0.0
    %233 = vmatprep.subr.mxu0 0.0
    %234 = vmatpush1.msra.mxu0 0.0
    %235 = vmatprep.mubr.f32.mxu0 0.0
    %236 = vmatmul.mubr.f32.gmra.mrb[0].mxu0 %v169
    %v237 = vpop.f32.mrb[0].mxu0
    %v238 = vadd.f32 0.0, %v237
    %v239 = vpop.f32.mrb[0].mxu0
    %240 = vdwg.mxu0
    %v242 = vsel %vm53, %v157, 0
    %244 = vmatprep.subr.mxu0 0.0
    %245 = vmatpush1.msra.mxu0 %v159
    %246 = vmatprep.subr.mxu0 0.0
    %247 = vmatpush1.msra.mxu0 %v160
    %248 = vmatprep.subr.mxu0 0.0
    %249 = vmatpush1.msra.mxu0 %v161
    %250 = vmatprep.subr.mxu0 0.0
    %251 = vmatpush1.msra.mxu0 %v162
    %252 = vmatprep.subr.mxu0 0.0
    %253 = vmatpush1.msra.mxu0 0.0
    %254 = vmatprep.subr.mxu0 0.0
    %255 = vmatpush1.msra.mxu0 0.0
    %256 = vmatprep.subr.mxu0 0.0
    %257 = vmatpush1.msra.mxu0 0.0
    %258 = vmatprep.subr.mxu0 0.0
    %259 = vmatpush1.msra.mxu0 0.0
    %260 = vmatprep.subr.mxu0 0.0
    %261 = vmatpush1.msra.mxu0 0.0
    %262 = vmatprep.subr.mxu0 0.0
    %263 = vmatpush1.msra.mxu0 0.0
    %264 = vmatprep.subr.mxu0 0.0
    %265 = vmatpush1.msra.mxu0 0.0
    %266 = vmatprep.subr.mxu0 0.0
    %267 = vmatpush1.msra.mxu0 0.0
    %268 = vmatprep.subr.mxu0 0.0
    %269 = vmatpush1.msra.mxu0 0.0
    %270 = vmatprep.subr.mxu0 0.0
    %271 = vmatpush1.msra.mxu0 0.0
    %272 = vmatprep.subr.mxu0 0.0
    %273 = vmatpush1.msra.mxu0 0.0
    %274 = vmatprep.subr.mxu0 0.0
    %275 = vmatpush1.msra.mxu0 0.0
    %276 = vmatprep.subr.mxu0 0.0
    %277 = vmatpush1.msra.mxu0 0.0
    %278 = vmatprep.subr.mxu0 0.0
    %279 = vmatpush1.msra.mxu0 0.0
    %280 = vmatprep.subr.mxu0 0.0
    %281 = vmatpush1.msra.mxu0 0.0
    %282 = vmatprep.subr.mxu0 0.0
    %283 = vmatpush1.msra.mxu0 0.0
    %284 = vmatprep.subr.mxu0 0.0
    %285 = vmatpush1.msra.mxu0 0.0
    %286 = vmatprep.subr.mxu0 0.0
    %287 = vmatpush1.msra.mxu0 0.0
    %288 = vmatprep.subr.mxu0 0.0
    %289 = vmatpush1.msra.mxu0 0.0
    %290 = vmatprep.subr.mxu0 0.0
    %291 = vmatpush1.msra.mxu0 0.0
    %292 = vmatprep.subr.mxu0 0.0
    %293 = vmatpush1.msra.mxu0 0.0
    %294 = vmatprep.subr.mxu0 0.0
    %295 = vmatpush1.msra.mxu0 0.0
    %296 = vmatprep.subr.mxu0 0.0
    %297 = vmatpush1.msra.mxu0 0.0
    %298 = vmatprep.subr.mxu0 0.0
    %299 = vmatpush1.msra.mxu0 0.0
    %300 = vmatprep.subr.mxu0 0.0
    %301 = vmatpush1.msra.mxu0 0.0
    %302 = vmatprep.subr.mxu0 0.0
    %303 = vmatpush1.msra.mxu0 0.0
    %304 = vmatprep.subr.mxu0 0.0
    %305 = vmatpush1.msra.mxu0 0.0
    %306 = vmatprep.subr.mxu0 0.0
    %307 = vmatpush1.msra.mxu0 0.0
    %308 = vmatprep.mubr.f32.mxu0 0.0
    %309 = vmatmul.mubr.f32.gmra.mrb[0].mxu0 %v242
    %v310 = vpop.f32.mrb[0].mxu0
    %v311 = vadd.f32 %v238, %v310
    %v312 = vpop.f32.mrb[0].mxu0
    %313 = vdwg.mxu0
    %v314 = vld [vmem:[%s5] sm:$0x1]
    %v316 = vlaneseq
    %v317 = vshrl.u32 %v316, 7
    %v318 = vsub.s32 0, %v317
    %v319 = vrot.slane %v314, %v318
    %v321 = vadd.f32 %v311, %v319
    %v322 = vmax.f32 %v321, 0.0
    %v323 = vld [vmem:[%s6] sm:$0xff]
    %v324 = vmul.f32 %v323, 1.1111112
    %v325 = vmul.f32 %v322, %v324
    %v326 = vld [vmem:[%s7] sm:$0xff]
    %v327 = vld [vmem:[%s7 + $0x8] sm:$0xff]
    %v328 = vld [vmem:[%s7 + $0x10] sm:$0xff]
    %v329 = vld [vmem:[%s7 + $0x18] sm:$0xff]
    %v330 = vld [vmem:[#allocation2] sm:$0x1]
    %v332 = vlaneseq
    %v333 = vshrl.u32 %v332, 7
    %v334 = vsub.s32 0, %v333
    %v335 = vrot.slane %v330, %v334
    %v338 = vsel %vm53, %v325, 0
    %340 = vmatprep.subr.mxu0 0.0
    %341 = vmatpush1.msra.mxu0 %v326
    %342 = vmatprep.subr.mxu0 0.0
    %343 = vmatpush1.msra.mxu0 %v327
    %344 = vmatprep.subr.mxu0 0.0
    %345 = vmatpush1.msra.mxu0 %v328
    %346 = vmatprep.subr.mxu0 0.0
    %347 = vmatpush1.msra.mxu0 %v329
    %348 = vmatprep.subr.mxu0 0.0
    %349 = vmatpush1.msra.mxu0 0.0
    %350 = vmatprep.subr.mxu0 0.0
    %351 = vmatpush1.msra.mxu0 0.0
    %352 = vmatprep.subr.mxu0 0.0
    %353 = vmatpush1.msra.mxu0 0.0
    %354 = vmatprep.subr.mxu0 0.0
    %355 = vmatpush1.msra.mxu0 0.0
    %356 = vmatprep.subr.mxu0 0.0
    %357 = vmatpush1.msra.mxu0 0.0
    %358 = vmatprep.subr.mxu0 0.0
    %359 = vmatpush1.msra.mxu0 0.0
    %360 = vmatprep.subr.mxu0 0.0
    %361 = vmatpush1.msra.mxu0 0.0
    %362 = vmatprep.subr.mxu0 0.0
    %363 = vmatpush1.msra.mxu0 0.0
    %364 = vmatprep.subr.mxu0 0.0
    %365 = vmatpush1.msra.mxu0 0.0
    %366 = vmatprep.subr.mxu0 0.0
    %367 = vmatpush1.msra.mxu0 0.0
    %368 = vmatprep.subr.mxu0 0.0
    %369 = vmatpush1.msra.mxu0 0.0
    %370 = vmatprep.subr.mxu0 0.0
    %371 = vmatpush1.msra.mxu0 0.0
    %372 = vmatprep.subr.mxu0 0.0
    %373 = vmatpush1.msra.mxu0 0.0
    %374 = vmatprep.subr.mxu0 0.0
    %375 = vmatpush1.msra.mxu0 0.0
    %376 = vmatprep.subr.mxu0 0.0
    %377 = vmatpush1.msra.mxu0 0.0
    %378 = vmatprep.subr.mxu0 0.0
    %379 = vmatpush1.msra.mxu0 0.0
    %380 = vmatprep.subr.mxu0 0.0
    %381 = vmatpush1.msra.mxu0 0.0
    %382 = vmatprep.subr.mxu0 0.0
    %383 = vmatpush1.msra.mxu0 0.0
    %384 = vmatprep.subr.mxu0 0.0
    %385 = vmatpush1.msra.mxu0 0.0
    %386 = vmatprep.subr.mxu0 0.0
    %387 = vmatpush1.msra.mxu0 0.0
    %388 = vmatprep.subr.mxu0 0.0
    %389 = vmatpush1.msra.mxu0 0.0
    %390 = vmatprep.subr.mxu0 0.0
    %391 = vmatpush1.msra.mxu0 0.0
    %392 = vmatprep.subr.mxu0 0.0
    %393 = vmatpush1.msra.mxu0 0.0
    %394 = vmatprep.subr.mxu0 0.0
    %395 = vmatpush1.msra.mxu0 0.0
    %396 = vmatprep.subr.mxu0 0.0
    %397 = vmatpush1.msra.mxu0 0.0
    %398 = vmatprep.subr.mxu0 0.0
    %399 = vmatpush1.msra.mxu0 0.0
    %400 = vmatprep.subr.mxu0 0.0
    %401 = vmatpush1.msra.mxu0 0.0
    %402 = vmatprep.subr.mxu0 0.0
    %403 = vmatpush1.msra.mxu0 0.0
    %404 = vmatprep.mubr.f32.mxu0 0.0
    %405 = vmatmul.mubr.f32.gmra.mrb[0].mxu0 %v338
    %v406 = vpop.f32.mrb[0].mxu0
    %v407 = vadd.f32 %v335, %v406
    %v408 = vpop.f32.mrb[0].mxu0
    %409 = vdwg.mxu0
    %vm410 = vcmask 7168
    %411 = vst.msk [vmem:[%s9] sm:$0xff] %vm410, %v407
    // Predicated region
    $region42: #{tpu_custom_call.1} parent=1 // pred_check
      _
    $region43: #{tpu_custom_call.1} parent=1 // pred_check_branch
      %413 = sbr.rel (0) target = $region45
    $region44: #{tpu_custom_call.1} parent=1 // pred_region
      _
    $region45: #{tpu_custom_call.1} parent=1 // pred_fallthru
      _
    // Predicated region
    $region46: #{tpu_custom_call.1} parent=1 // pred_check
      _
    $region47: #{tpu_custom_call.1} parent=1 // pred_check_branch
      %415 = sbr.rel (0) target = $region49
    $region48: #{tpu_custom_call.1} parent=1 // pred_region
      _
    $region49: #{tpu_custom_call.1} parent=1 // pred_fallthru
      _
    %416 = vsyncpa [#allocation4], 1

</llo_original>
